<compile_context>
chip_gen: v5e
topology: v5e:2x2
jax: 0.10.0
libtpu: 0.0.40
codegen_flags: <defaults>
</compile_context>

<pallas_src>
import functools

import jax
import jax.numpy as jnp
from jax import lax
from jax.experimental import pallas as pl
from jax.experimental.pallas import tpu as pltpu


def _gelu_exact(x):
    # PyTorch nn.GELU() default is the exact erf formulation.
    return 0.5 * x * (1.0 + lax.erf(x * (1.0 / jnp.sqrt(2.0).astype(x.dtype))))


def tcond_kernel(x_ref, t_ref,
                 w1t_ref, b1t_ref, w2t_ref, b2t_ref,
                 w1x_ref, b1x_ref, w2x_ref, b2x_ref,
                 out_ref, acc_ref, *, hw_true, tail_rem):
    # Grid: (batch blocks, HW reduction blocks). Reduction axis is last.
    j = pl.program_id(1)
    last = pl.num_programs(1) - 1

    @pl.when(j == 0)
    def _init():
        acc_ref[...] = jnp.zeros_like(acc_ref)

    if tail_rem == 0:
        # All spatial tiles are full: steady state is just a partial sum.
        acc_ref[...] += jnp.sum(x_ref[...], axis=-1)          # (bB, dim)
    else:
        # Ragged spatial tail: Pallas does NOT zero out-of-bounds input data,
        # so the last tile must be masked.  Full tiles stay on the fast path.
        @pl.when(j < last)
        def _full():
            acc_ref[...] += jnp.sum(x_ref[...], axis=-1)

        @pl.when(j == last)
        def _tail():
            xv = x_ref[...]
            lane = lax.broadcasted_iota(jnp.int32, xv.shape, xv.ndim - 1)
            xm = jnp.where(lane < tail_rem, xv, jnp.float32(0.0))
            acc_ref[...] += jnp.sum(xm, axis=-1)

    @pl.when(j == last)
    def _finalize():
        x_mean = acc_ref[...] * jnp.float32(1.0 / hw_true)

        # t_embedding: Linear(1, dim) is a broadcast multiply-add (no MXU needed).
        t = t_ref[...]                                        # (bB, 1)
        t_h = _gelu_exact(t * w1t_ref[...] + b1t_ref[...])    # (bB, dim)
        t_emb = jnp.dot(t_h, w2t_ref[...],
                        preferred_element_type=jnp.float32) + b2t_ref[...]

        # x_embedding applied to (x_mean + t_emb)
        h = x_mean + t_emb
        h1 = _gelu_exact(jnp.dot(h, w1x_ref[...],
                                 preferred_element_type=jnp.float32) + b1x_ref[...])
        out = jnp.dot(h1, w2x_ref[...],
                      preferred_element_type=jnp.float32) + b2x_ref[...]
        out_ref[...] = (out * jnp.float32(0.1)).astype(out_ref.dtype)


def _choose_tiles(B, C, HW, *,
                  target_block_bytes=8 << 20,     # ~8 MiB x blocks (amortize per-step overhead)
                  vmem_budget_bytes=40 << 20):    # conservative across v5e/v6e/v7x
    """Jointly pick (bB, tHW) so 2*x_block + resident weights fit VMEM."""
    db = 4  # f32 bytes
    # Weights/biases are VMEM-resident and double-buffered by Pallas.
    weight_bytes = 2 * (3 * C * C + 5 * C) * db
    margin = 4 << 20
    max_block_bytes = min(target_block_bytes,
                          max((vmem_budget_bytes - weight_bytes - margin) // 2,
                              1 << 20))

    lane = 128 if HW >= 128 else HW

    # Batch tile: whole batch when it fits alongside one lane-tile of columns;
    # otherwise a multiple of 8 (BlockSpec constraint on the (bB, C) output and
    # (bB, 1) t blocks), preferring a divisor of B.
    max_bB = max(1, max_block_bytes // (C * lane * db))
    if B <= max_bB:
        bB = B
    else:
        bB = max(8, (max_bB // 8) * 8)
        for cand in range(bB, 7, -8):
            if B % cand == 0:
                bB = cand
                break

    # Spatial tile: as large as fits.  Preference order:
    #   (a) whole HW in one block (full-dim block is always layout-legal),
    #   (b) a multiple of 128 dividing HW within 2x of the max size (no masking),
    #   (c) the largest multiple of 128 (ragged tail masked in-kernel).
    bytes_per_col = bB * C * db
    if HW < 128:
        tHW = HW
    else:
        max_cols = max(lane, (max_block_bytes // bytes_per_col) // 128 * 128)
        if HW <= max_cols:
            tHW = HW
        else:
            best = (max_cols // 128) * 128
            tHW = best
            for cand in range(best, max(best // 2, 127), -128):
                if HW % cand == 0:
                    tHW = cand
                    break
    return int(bB), int(tHW)


def tcond_forward(x_nchw, t, params, *, _force_tiles=None):
    """x_nchw: (B, dim, H, W) float32; t: (B, 1) float32.

    Weights in `params` are (in, out); transpose when loading torch (out, in).
    """
    B, C, H, W = x_nchw.shape
    HW = H * W
    x_flat = x_nchw.reshape(B, C, HW)   # contiguous reshape: no HBM copy

    if _force_tiles is None:
        bB, tHW = _choose_tiles(B, C, HW)
    else:
        bB, tHW = _force_tiles

    grid = (pl.cdiv(B, bB), pl.cdiv(HW, tHW))
    tail_rem = HW % tHW                 # ragged spatial tail handled in-kernel

    resident = lambda shape: pl.BlockSpec(shape, lambda i, j: (0,) * len(shape))

    dim = C
    cost = pl.CostEstimate(
        flops=B * dim * HW + 6 * B * dim * dim,
        transcendentals=2 * B * dim,
        bytes_accessed=4 * (B * dim * HW + 3 * dim * dim + 5 * dim + B + B * dim),
    )

    # VMEM limit computed from actual usage (+headroom) -- never blanket-request
    # the full physical VMEM (fatal headroom loss on v7x).
    x_block_bytes = bB * C * tHW * 4
    weight_bytes = (3 * C * C + 5 * C) * 4
    small_bytes = (bB + 2 * bB * C) * 4              # t + out blocks + acc
    vmem_needed = 2 * x_block_bytes + 2 * weight_bytes + 2 * small_bytes
    vmem_limit = int(max(vmem_needed + (4 << 20), 8 << 20))

    # TODO(synk): for very large dim, single-buffer the constant-index weight
    # specs (pipeline_mode=pl.Buffered(1)) to halve their VMEM residency.

    out = pl.pallas_call(
        functools.partial(tcond_kernel, hw_true=float(HW), tail_rem=int(tail_rem)),
        out_shape=jax.ShapeDtypeStruct((B, C), jnp.float32),
        grid_spec=pltpu.PrefetchScalarGridSpec(
            num_scalar_prefetch=0,
            grid=grid,
            in_specs=[
                # x: streamed over the HW reduction axis (double-buffered DMA).
                pl.BlockSpec((bB, C, tHW), lambda i, j: (i, 0, j)),
                # t: per-batch block, resident across the reduction.
                pl.BlockSpec((bB, 1), lambda i, j: (i, 0)),
                # Weights / biases: DMA'd once, stay VMEM-resident.
                resident((1, C)),      # w1t
                resident((1, C)),      # b1t
                resident((C, C)),      # w2t
                resident((1, C)),      # b2t
                resident((C, C)),      # w1x
                resident((1, C)),      # b1x
                resident((C, C)),      # w2x
                resident((1, C)),      # b2x
            ],
            out_specs=pl.BlockSpec((bB, C), lambda i, j: (i, 0)),
            scratch_shapes=[pltpu.VMEM((bB, C), jnp.float32)],
        ),
        compiler_params=pltpu.CompilerParams(
            dimension_semantics=("parallel", "arbitrary"),
            vmem_limit_bytes=vmem_limit,
        ),
        cost_estimate=cost,
    )(
        x_flat, t,
        params["w1t"], params["b1t"], params["w2t"], params["b2t"],
        params["w1x"], params["b1x"], params["w2x"], params["b2x"],
    )
    return out


def init_params(dim, key):
    ks = jax.random.split(key, 8)
    s = 0.1
    return {
        # Linear(1, dim): weight stored as (in=1, out=dim)
        "w1t": s * jax.random.normal(ks[0], (1, dim), jnp.float32),
        "b1t": s * jax.random.normal(ks[1], (1, dim), jnp.float32),
        # Linear(dim, dim)
        "w2t": s * jax.random.normal(ks[2], (dim, dim), jnp.float32),
        "b2t": s * jax.random.normal(ks[3], (1, dim), jnp.float32),
        # x_embedding Linear(dim, dim) x2
        "w1x": s * jax.random.normal(ks[4], (dim, dim), jnp.float32),
        "b1x": s * jax.random.normal(ks[5], (1, dim), jnp.float32),
        "w2x": s * jax.random.normal(ks[6], (dim, dim), jnp.float32),
        "b2x": s * jax.random.normal(ks[7], (1, dim), jnp.float32),
    }


def tcond_reference(x_nchw, t, p):
    # Pure-JAX reference of the PyTorch forward.
    gelu = lambda v: jax.nn.gelu(v, approximate=False)
    t_emb = gelu(t @ p["w1t"] + p["b1t"]) @ p["w2t"] + p["b2t"]
    x_mean = x_nchw.mean(axis=(-1, -2))
    h = x_mean + t_emb
    return (gelu(h @ p["w1x"] + p["b1x"]) @ p["w2x"] + p["b2x"]) * 0.1


if __name__ == "__main__":
    key = jax.random.PRNGKey(0)
    kx, kt, kp = jax.random.split(key, 3)

    # --- Primary case: module defaults (dim=32), small spatial, auto tiling ---
    B, dim, Hs, Ws = 2, 32, 16, 16
    x = jax.random.normal(kx, (B, dim, Hs, Ws), jnp.float32)   # NCHW
    t = jax.random.uniform(kt, (B, 1), jnp.float32)
    params = init_params(dim, kp)

    out = jax.block_until_ready(tcond_forward(x, t, params))
    ref = tcond_reference(x, t, params)
    assert out.shape == (B, dim)
    assert jnp.allclose(out, ref, atol=1e-5, rtol=1e-5), (
        f"max abs err {jnp.max(jnp.abs(out - ref))}")

    # --- Ragged spatial tail: HW=320 with forced tHW=128 exercises the
    #     in-kernel tail masking path (no wrapper jnp.pad copy). ---
    x2 = jax.random.normal(jax.random.fold_in(kx, 1), (B, dim, 16, 20), jnp.float32)
    out2 = jax.block_until_ready(tcond_forward(x2, t, params, _force_tiles=(B, 128)))
    ref2 = tcond_reference(x2, t, params)
    assert jnp.allclose(out2, ref2, atol=1e-5, rtol=1e-5), (
        f"tail-mask max abs err {jnp.max(jnp.abs(out2 - ref2))}")

    # --- Batch-tiled grid: B=16 with bB=8 exercises a non-degenerate
    #     "parallel" batch axis (v7x megacore sharding). ---
    B3 = 16
    x3 = jax.random.normal(jax.random.fold_in(kx, 2), (B3, dim, 8, 8), jnp.float32)
    t3 = jax.random.uniform(jax.random.fold_in(kt, 2), (B3, 1), jnp.float32)
    out3 = jax.block_until_ready(tcond_forward(x3, t3, params, _force_tiles=(8, 64)))
    ref3 = tcond_reference(x3, t3, params)
    assert jnp.allclose(out3, ref3, atol=1e-5, rtol=1e-5), (
        f"batch-tiled max abs err {jnp.max(jnp.abs(out3 - ref3))}")

    print("KERNEL_OK")
</pallas_src>

<mosaic_0001>
module attributes {stable_mosaic.version = 11 : i64} {
  func.func @tcond_kernel(%arg0: i32, %arg1: i32, %arg2: memref<2x32x256xf32, #tpu.memory_space<vmem>>, %arg3: memref<2x1xf32, #tpu.memory_space<vmem>>, %arg4: memref<1x32xf32, #tpu.memory_space<vmem>>, %arg5: memref<1x32xf32, #tpu.memory_space<vmem>>, %arg6: memref<32x32xf32, #tpu.memory_space<vmem>>, %arg7: memref<1x32xf32, #tpu.memory_space<vmem>>, %arg8: memref<32x32xf32, #tpu.memory_space<vmem>>, %arg9: memref<1x32xf32, #tpu.memory_space<vmem>>, %arg10: memref<32x32xf32, #tpu.memory_space<vmem>>, %arg11: memref<1x32xf32, #tpu.memory_space<vmem>>, %arg12: memref<2x32xf32, #tpu.memory_space<vmem>>, %arg13: memref<2x32xf32, #tpu.memory_space<vmem>>) attributes {dimension_semantics = [#tpu.dimension_semantics<parallel>, #tpu.dimension_semantics<arbitrary>], iteration_bounds = array<i64: 1, 1>, scalar_prefetch = 0 : i64, scratch_operands = 1 : i64, tpu.core_type = #tpu.core_type<tc>, window_params = [{transform_indices = @transform_0, window_bounds = array<i64: 2, 32, 256>}, {transform_indices = @transform_1, window_bounds = array<i64: 2, 1>}, {pipeline_mode = #tpu.pipeline_mode<synchronous>, transform_indices = @transform_2, window_bounds = array<i64: 1, 32>}, {pipeline_mode = #tpu.pipeline_mode<synchronous>, transform_indices = @transform_3, window_bounds = array<i64: 1, 32>}, {pipeline_mode = #tpu.pipeline_mode<synchronous>, transform_indices = @transform_4, window_bounds = array<i64: 32, 32>}, {pipeline_mode = #tpu.pipeline_mode<synchronous>, transform_indices = @transform_5, window_bounds = array<i64: 1, 32>}, {pipeline_mode = #tpu.pipeline_mode<synchronous>, transform_indices = @transform_6, window_bounds = array<i64: 32, 32>}, {pipeline_mode = #tpu.pipeline_mode<synchronous>, transform_indices = @transform_7, window_bounds = array<i64: 1, 32>}, {pipeline_mode = #tpu.pipeline_mode<synchronous>, transform_indices = @transform_8, window_bounds = array<i64: 32, 32>}, {pipeline_mode = #tpu.pipeline_mode<synchronous>, transform_indices = @transform_9, window_bounds = array<i64: 1, 32>}, {transform_indices = @transform_10, window_bounds = array<i64: 2, 32>}]} {
    %c0_i32 = arith.constant 0 : i32
    %0 = arith.cmpi eq, %arg1, %c0_i32 : i32
    %1 = arith.extui %0 : i1 to i32
    %c0_i32_0 = arith.constant 0 : i32
    %2 = arith.cmpi ne, %1, %c0_i32_0 : i32
    scf.if %2 {
      %cst_9 = arith.constant 0.000000e+00 : f32
      %11 = vector.broadcast %cst_9 : f32 to vector<2x32xf32>
      %c0_10 = arith.constant 0 : index
      %c0_11 = arith.constant 0 : index
      %12 = vector.load %arg13[%c0_10, %c0_11] : memref<2x32xf32, #tpu.memory_space<vmem>>, vector<2x32xf32>
      tpu.vector_store %arg13[%c0_10, %c0_11], %11 {strides = array<i32>} : memref<2x32xf32, #tpu.memory_space<vmem>>, vector<2x32xf32>,
    } else {
    }
    %c0 = arith.constant 0 : index
    %c0_1 = arith.constant 0 : index
    %3 = vector.load %arg13[%c0, %c0_1] : memref<2x32xf32, #tpu.memory_space<vmem>>, vector<2x32xf32>
    %c0_2 = arith.constant 0 : index
    %c0_3 = arith.constant 0 : index
    %c0_4 = arith.constant 0 : index
    %4 = vector.load %arg2[%c0_2, %c0_3, %c0_4] : memref<2x32x256xf32, #tpu.memory_space<vmem>>, vector<2x32x256xf32>
    %cst = arith.constant dense<0.000000e+00> : vector<2x32xf32>
    %5 = vector.multi_reduction <add>, %4, %cst [2] : vector<2x32x256xf32> to vector<2x32xf32>
    %6 = arith.addf %3, %5 : vector<2x32xf32>
    %c0_5 = arith.constant 0 : index
    %c0_6 = arith.constant 0 : index
    %7 = vector.load %arg13[%c0_5, %c0_6] : memref<2x32xf32, #tpu.memory_space<vmem>>, vector<2x32xf32>
    tpu.vector_store %arg13[%c0_5, %c0_6], %6 {strides = array<i32>} : memref<2x32xf32, #tpu.memory_space<vmem>>, vector<2x32xf32>,
    %c0_i32_7 = arith.constant 0 : i32
    %8 = arith.cmpi eq, %arg1, %c0_i32_7 : i32
    %9 = arith.extui %8 : i1 to i32
    %c0_i32_8 = arith.constant 0 : i32
    %10 = arith.cmpi ne, %9, %c0_i32_8 : i32
    scf.if %10 {
      %c0_9 = arith.constant 0 : index
      %c0_10 = arith.constant 0 : index
      %11 = vector.load %arg13[%c0_9, %c0_10] : memref<2x32xf32, #tpu.memory_space<vmem>>, vector<2x32xf32>
      %cst_11 = arith.constant 3.906250e-03 : f32
      %12 = vector.broadcast %cst_11 : f32 to vector<2x32xf32>
      %13 = arith.mulf %11, %12 : vector<2x32xf32>
      %c0_12 = arith.constant 0 : index
      %c0_13 = arith.constant 0 : index
      %14 = vector.load %arg3[%c0_12, %c0_13] : memref<2x1xf32, #tpu.memory_space<vmem>>, vector<2x1xf32>
      %c0_14 = arith.constant 0 : index
      %c0_15 = arith.constant 0 : index
      %15 = vector.load %arg4[%c0_14, %c0_15] : memref<1x32xf32, #tpu.memory_space<vmem>>, vector<1x32xf32>
      %16 = vector.broadcast %14 : vector<2x1xf32> to vector<2x32xf32>
      %17 = vector.broadcast %15 : vector<1x32xf32> to vector<2x32xf32>
      %18 = arith.mulf %16, %17 : vector<2x32xf32>
      %c0_16 = arith.constant 0 : index
      %c0_17 = arith.constant 0 : index
      %19 = vector.load %arg5[%c0_16, %c0_17] : memref<1x32xf32, #tpu.memory_space<vmem>>, vector<1x32xf32>
      %20 = vector.broadcast %19 : vector<1x32xf32> to vector<2x32xf32>
      %21 = arith.addf %18, %20 : vector<2x32xf32>
      %cst_18 = arith.constant 5.000000e-01 : f32
      %22 = vector.broadcast %cst_18 : f32 to vector<2x32xf32>
      %23 = arith.mulf %22, %21 : vector<2x32xf32>
      %cst_19 = arith.constant 2.000000e+00 : f32
      %24 = math.sqrt %cst_19 : f32
      %cst_20 = arith.constant 1.000000e+00 : f32
      %25 = arith.divf %cst_20, %24 : f32
      %26 = vector.broadcast %25 : f32 to vector<2x32xf32>
      %27 = arith.mulf %21, %26 : vector<2x32xf32>
      %28 = math.erf %27 : vector<2x32xf32>
      %cst_21 = arith.constant 1.000000e+00 : f32
      %29 = vector.broadcast %cst_21 : f32 to vector<2x32xf32>
      %30 = arith.addf %29, %28 : vector<2x32xf32>
      %31 = arith.mulf %23, %30 : vector<2x32xf32>
      %c0_22 = arith.constant 0 : index
      %c0_23 = arith.constant 0 : index
      %32 = vector.load %arg6[%c0_22, %c0_23] : memref<32x32xf32, #tpu.memory_space<vmem>>, vector<32x32xf32>
      %cst_24 = arith.constant dense<0.000000e+00> : vector<2x32xf32>
      %33 = tpu.matmul %31, %32, %cst_24 {dimension_numbers = #tpu.dot_dimension_numbers<[1], [0], [0], [1], [0, 0, 1, 1], [], []>} : vector<2x32xf32>, vector<32x32xf32>, vector<2x32xf32> -> vector<2x32xf32>
      %c0_25 = arith.constant 0 : index
      %c0_26 = arith.constant 0 : index
      %34 = vector.load %arg7[%c0_25, %c0_26] : memref<1x32xf32, #tpu.memory_space<vmem>>, vector<1x32xf32>
      %35 = vector.broadcast %34 : vector<1x32xf32> to vector<2x32xf32>
      %36 = arith.addf %33, %35 : vector<2x32xf32>
      %37 = arith.addf %13, %36 : vector<2x32xf32>
      %c0_27 = arith.constant 0 : index
      %c0_28 = arith.constant 0 : index
      %38 = vector.load %arg8[%c0_27, %c0_28] : memref<32x32xf32, #tpu.memory_space<vmem>>, vector<32x32xf32>
      %cst_29 = arith.constant dense<0.000000e+00> : vector<2x32xf32>
      %39 = tpu.matmul %37, %38, %cst_29 {dimension_numbers = #tpu.dot_dimension_numbers<[1], [0], [0], [1], [0, 0, 1, 1], [], []>} : vector<2x32xf32>, vector<32x32xf32>, vector<2x32xf32> -> vector<2x32xf32>
      %c0_30 = arith.constant 0 : index
      %c0_31 = arith.constant 0 : index
      %40 = vector.load %arg9[%c0_30, %c0_31] : memref<1x32xf32, #tpu.memory_space<vmem>>, vector<1x32xf32>
      %41 = vector.broadcast %40 : vector<1x32xf32> to vector<2x32xf32>
      %42 = arith.addf %39, %41 : vector<2x32xf32>
      %cst_32 = arith.constant 5.000000e-01 : f32
      %43 = vector.broadcast %cst_32 : f32 to vector<2x32xf32>
      %44 = arith.mulf %43, %42 : vector<2x32xf32>
      %cst_33 = arith.constant 2.000000e+00 : f32
      %45 = math.sqrt %cst_33 : f32
      %cst_34 = arith.constant 1.000000e+00 : f32
      %46 = arith.divf %cst_34, %45 : f32
      %47 = vector.broadcast %46 : f32 to vector<2x32xf32>
      %48 = arith.mulf %42, %47 : vector<2x32xf32>
      %49 = math.erf %48 : vector<2x32xf32>
      %cst_35 = arith.constant 1.000000e+00 : f32
      %50 = vector.broadcast %cst_35 : f32 to vector<2x32xf32>
      %51 = arith.addf %50, %49 : vector<2x32xf32>
      %52 = arith.mulf %44, %51 : vector<2x32xf32>
      %c0_36 = arith.constant 0 : index
      %c0_37 = arith.constant 0 : index
      %53 = vector.load %arg10[%c0_36, %c0_37] : memref<32x32xf32, #tpu.memory_space<vmem>>, vector<32x32xf32>
      %cst_38 = arith.constant dense<0.000000e+00> : vector<2x32xf32>
      %54 = tpu.matmul %52, %53, %cst_38 {dimension_numbers = #tpu.dot_dimension_numbers<[1], [0], [0], [1], [0, 0, 1, 1], [], []>} : vector<2x32xf32>, vector<32x32xf32>, vector<2x32xf32> -> vector<2x32xf32>
      %c0_39 = arith.constant 0 : index
      %c0_40 = arith.constant 0 : index
      %55 = vector.load %arg11[%c0_39, %c0_40] : memref<1x32xf32, #tpu.memory_space<vmem>>, vector<1x32xf32>
      %56 = vector.broadcast %55 : vector<1x32xf32> to vector<2x32xf32>
      %57 = arith.addf %54, %56 : vector<2x32xf32>
      %cst_41 = arith.constant 1.000000e-01 : f32
      %58 = vector.broadcast %cst_41 : f32 to vector<2x32xf32>
      %59 = arith.mulf %57, %58 : vector<2x32xf32>
      %c0_42 = arith.constant 0 : index
      %c0_43 = arith.constant 0 : index
      %60 = vector.load %arg12[%c0_42, %c0_43] : memref<2x32xf32, #tpu.memory_space<vmem>>, vector<2x32xf32>
      tpu.vector_store %arg12[%c0_42, %c0_43], %59 {strides = array<i32>} : memref<2x32xf32, #tpu.memory_space<vmem>>, vector<2x32xf32>,
    } else {
    }
    return
  }
  func.func @transform_0(%arg0: i32, %arg1: i32) -> (i32, i32, i32) {
    %c0_i32 = arith.constant 0 : i32
    %c0_i32_0 = arith.constant 0 : i32
    return %arg0, %c0_i32, %arg1 : i32, i32, i32
  }
  func.func @transform_1(%arg0: i32, %arg1: i32) -> (i32, i32) {
    %c0_i32 = arith.constant 0 : i32
    %c0_i32_0 = arith.constant 0 : i32
    return %arg0, %c0_i32 : i32, i32
  }
  func.func @transform_2(%arg0: i32, %arg1: i32) -> (i32, i32) {
    %c0_i32 = arith.constant 0 : i32
    %c0_i32_0 = arith.constant 0 : i32
    %c0_i32_1 = arith.constant 0 : i32
    return %c0_i32, %c0_i32_0 : i32, i32
  }
  func.func @transform_3(%arg0: i32, %arg1: i32) -> (i32, i32) {
    %c0_i32 = arith.constant 0 : i32
    %c0_i32_0 = arith.constant 0 : i32
    %c0_i32_1 = arith.constant 0 : i32
    return %c0_i32, %c0_i32_0 : i32, i32
  }
  func.func @transform_4(%arg0: i32, %arg1: i32) -> (i32, i32) {
    %c0_i32 = arith.constant 0 : i32
    %c0_i32_0 = arith.constant 0 : i32
    %c0_i32_1 = arith.constant 0 : i32
    return %c0_i32, %c0_i32_0 : i32, i32
  }
  func.func @transform_5(%arg0: i32, %arg1: i32) -> (i32, i32) {
    %c0_i32 = arith.constant 0 : i32
    %c0_i32_0 = arith.constant 0 : i32
    %c0_i32_1 = arith.constant 0 : i32
    return %c0_i32, %c0_i32_0 : i32, i32
  }
  func.func @transform_6(%arg0: i32, %arg1: i32) -> (i32, i32) {
    %c0_i32 = arith.constant 0 : i32
    %c0_i32_0 = arith.constant 0 : i32
    %c0_i32_1 = arith.constant 0 : i32
    return %c0_i32, %c0_i32_0 : i32, i32
  }
  func.func @transform_7(%arg0: i32, %arg1: i32) -> (i32, i32) {
    %c0_i32 = arith.constant 0 : i32
    %c0_i32_0 = arith.constant 0 : i32
    %c0_i32_1 = arith.constant 0 : i32
    return %c0_i32, %c0_i32_0 : i32, i32
  }
  func.func @transform_8(%arg0: i32, %arg1: i32) -> (i32, i32) {
    %c0_i32 = arith.constant 0 : i32
    %c0_i32_0 = arith.constant 0 : i32
    %c0_i32_1 = arith.constant 0 : i32
    return %c0_i32, %c0_i32_0 : i32, i32
  }
  func.func @transform_9(%arg0: i32, %arg1: i32) -> (i32, i32) {
    %c0_i32 = arith.constant 0 : i32
    %c0_i32_0 = arith.constant 0 : i32
    %c0_i32_1 = arith.constant 0 : i32
    return %c0_i32, %c0_i32_0 : i32, i32
  }
  func.func @transform_10(%arg0: i32, %arg1: i32) -> (i32, i32) {
    %c0_i32 = arith.constant 0 : i32
    %c0_i32_0 = arith.constant 0 : i32
    return %arg0, %c0_i32 : i32, i32
  }
}

</mosaic_0001>

<llo_original>
// kernel: tpu_custom_call.1
$region0: #{tpu_custom_call.1}
  #allocation0 [shape = 'u32[]', space=smem, size = 0x4, offset = 0x4, fixed_abs, tag = 'smem constant byte address 0x4 - core index']
  #allocation1 [shape = 'u32[72,128]{1,0:T(1,128)}', space=vmem, size = 0x9000, scoped, tag = 'internal scratch']
  #allocation2 [shape = 'f32[2,32]{1,0:T(2,128)}', space=vmem, size = 0x400, scoped, tag = 'scratch operand']
  %s0 = inlined_call_operand.hbm [shape: f32[2,32,256], index: 0, kind: input, shape index: {}]
  %s1 = inlined_call_operand.vmem [shape: f32[2,1], index: 1, kind: input, shape index: {}]
  %s2 = inlined_call_operand.vmem [shape: f32[1,32], index: 2, kind: input, shape index: {}]
  %s3 = inlined_call_operand.vmem [shape: f32[1,32], index: 3, kind: input, shape index: {}]
  %s4 = inlined_call_operand.hbm [shape: f32[32,32], index: 4, kind: input, shape index: {}]
  %s5 = inlined_call_operand.vmem [shape: f32[1,32], index: 5, kind: input, shape index: {}]
  %s6 = inlined_call_operand.hbm [shape: f32[32,32], index: 6, kind: input, shape index: {}]
  %s7 = inlined_call_operand.vmem [shape: f32[1,32], index: 7, kind: input, shape index: {}]
  %s8 = inlined_call_operand.hbm [shape: f32[32,32], index: 8, kind: input, shape index: {}]
  %s9 = inlined_call_operand.vmem [shape: f32[1,32], index: 9, kind: input, shape index: {}]
  %s10 = inlined_call_operand.hbm [shape: f32[2,32], index: 10, kind: output, shape index: {}]
  %s11 = sld [smem:[#allocation0]]
  $region74: #{tpu_custom_call.1} parent=0
    _
  %s13 = ssub.s32 1, %s11
  %s14 = scalar_select 0, %s13, %s11
  $region1: #{tpu_custom_call.1} parent=0
    #allocation3 [shape = 'u8[65536]{0}', space=vmem, size = 0x10000, scoped, tag = 'input window, operand 0, single buffered']
    #allocation4 [shape = 's32[1]{0}', space=sflag, size = 0x4, scoped, tag = 'scoped memory for tpu_custom_call.1']
    #allocation5 [shape = 's32[1]{0}', space=sflag, size = 0x4, scoped, tag = 'scoped memory for tpu_custom_call.1']
    #allocation6 [shape = 'u8[16384]{0}', space=vmem, size = 0x4000, scoped, tag = 'input window, operand 4, single buffered']
    #allocation7 [shape = 's32[1]{0}', space=sflag, size = 0x4, scoped, tag = 'scoped memory for tpu_custom_call.1']
    #allocation8 [shape = 'u8[16384]{0}', space=vmem, size = 0x4000, scoped, tag = 'input window, operand 6, single buffered']
    #allocation9 [shape = 'u8[16384]{0}', space=vmem, size = 0x4000, scoped, tag = 'input window, operand 8, single buffered']
    #allocation10 [shape = 's32[1]{0}', space=sflag, size = 0x4, scoped, tag = 'scoped memory for tpu_custom_call.1']
    #allocation11 [shape = 'u8[1024]{0}', space=vmem, size = 0x400, scoped, tag = 'output window, operand 0, single buffered']
    %15 = vsyncpa [#allocation4], 0
    %16 = vsyncpa [#allocation7], 0
    %17 = vsyncpa [#allocation10], 0
    %18 = vsyncpa [#allocation5], 0
    // Predicated region
    $region2: #{tpu_custom_call.1} parent=1 // pred_check
      _
    $region3: #{tpu_custom_call.1} parent=1 // pred_check_branch
      %20 = sbr.rel (0) target = $region5
    $region4: #{tpu_custom_call.1} parent=1 // pred_region
      %22 = vsyncadd [#allocation4], 0
      %s23 = sshll.u32 %s0, 4
      %s24 = int_to_ptr.hbm [resolvable:$true] %s23
      %s25 = sshll.u32 [#allocation3], 4
      %s26 = int_to_ptr.vmem [resolvable:$true] %s25
      %31 = dma.hbm_to_vmem [thread:$0]  %s24, 2048, %s26, [#allocation4], 256, 256, 16
    $region5: #{tpu_custom_call.1} parent=1 // pred_fallthru
      _
    // Predicated region
    $region6: #{tpu_custom_call.1} parent=1 // pred_check
      _
    $region7: #{tpu_custom_call.1} parent=1 // pred_check_branch
      %33 = sbr.rel (0) target = $region9
    $region8: #{tpu_custom_call.1} parent=1 // pred_region
      _
    $region9: #{tpu_custom_call.1} parent=1 // pred_fallthru
      _
    // Predicated region
    $region10: #{tpu_custom_call.1} parent=1 // pred_check
      _
    $region11: #{tpu_custom_call.1} parent=1 // pred_check_branch
      %35 = sbr.rel (0) target = $region13
    $region12: #{tpu_custom_call.1} parent=1 // pred_region
      _
    $region13: #{tpu_custom_call.1} parent=1 // pred_fallthru
      _
    // Predicated region
    $region14: #{tpu_custom_call.1} parent=1 // pred_check
      _
    $region15: #{tpu_custom_call.1} parent=1 // pred_check_branch
      %37 = sbr.rel (0) target = $region17
    $region16: #{tpu_custom_call.1} parent=1 // pred_region
      _
    $region17: #{tpu_custom_call.1} parent=1 // pred_fallthru
      _
    // Predicated region
    $region18: #{tpu_custom_call.1} parent=1 // pred_check
      _
    $region19: #{tpu_custom_call.1} parent=1 // pred_check_branch
      %39 = sbr.rel (0) target = $region21
    $region20: #{tpu_custom_call.1} parent=1 // pred_region
      %41 = vsyncadd [#allocation7], 0
      %s42 = sshll.u32 %s4, 4
      %s43 = int_to_ptr.hbm [resolvable:$true] %s42
      %s44 = sshll.u32 [#allocation6], 4
      %s45 = int_to_ptr.vmem [resolvable:$true] %s44
      %50 = dma.hbm_to_vmem [thread:$0]  %s43, 512, %s45, [#allocation7], 128, 128, 8
    $region21: #{tpu_custom_call.1} parent=1 // pred_fallthru
      _
    // Predicated region
    $region22: #{tpu_custom_call.1} parent=1 // pred_check
      _
    $region23: #{tpu_custom_call.1} parent=1 // pred_check_branch
      %52 = sbr.rel (0) target = $region25
    $region24: #{tpu_custom_call.1} parent=1 // pred_region
      _
    $region25: #{tpu_custom_call.1} parent=1 // pred_fallthru
      _
    // Predicated region
    $region26: #{tpu_custom_call.1} parent=1 // pred_check
      _
    $region27: #{tpu_custom_call.1} parent=1 // pred_check_branch
      %54 = sbr.rel (0) target = $region29
    $region28: #{tpu_custom_call.1} parent=1 // pred_region
      %56 = vsyncadd [#allocation7], 0
      %s57 = sshll.u32 %s6, 4
      %s58 = int_to_ptr.hbm [resolvable:$true] %s57
      %s59 = sshll.u32 [#allocation8], 4
      %s60 = int_to_ptr.vmem [resolvable:$true] %s59
      %65 = dma.hbm_to_vmem [thread:$0]  %s58, 512, %s60, [#allocation7], 128, 128, 8
    $region29: #{tpu_custom_call.1} parent=1 // pred_fallthru
      _
    // Predicated region
    $region30: #{tpu_custom_call.1} parent=1 // pred_check
      _
    $region31: #{tpu_custom_call.1} parent=1 // pred_check_branch
      %67 = sbr.rel (0) target = $region33
    $region32: #{tpu_custom_call.1} parent=1 // pred_region
      _
    $region33: #{tpu_custom_call.1} parent=1 // pred_fallthru
      _
    // Predicated region
    $region34: #{tpu_custom_call.1} parent=1 // pred_check
      _
    $region35: #{tpu_custom_call.1} parent=1 // pred_check_branch
      %69 = sbr.rel (0) target = $region37
    $region36: #{tpu_custom_call.1} parent=1 // pred_region
      %71 = vsyncadd [#allocation10], 0
      %s72 = sshll.u32 %s8, 4
      %s73 = int_to_ptr.hbm [resolvable:$true] %s72
      %s74 = sshll.u32 [#allocation9], 4
      %s75 = int_to_ptr.vmem [resolvable:$true] %s74
      %80 = dma.hbm_to_vmem [thread:$0]  %s73, 512, %s75, [#allocation10], 128, 128, 8
    $region37: #{tpu_custom_call.1} parent=1 // pred_fallthru
      _
    // Predicated region
    $region38: #{tpu_custom_call.1} parent=1 // pred_check
      _
    $region39: #{tpu_custom_call.1} parent=1 // pred_check_branch
      %82 = sbr.rel (0) target = $region41
    $region40: #{tpu_custom_call.1} parent=1 // pred_region
      _
    $region41: #{tpu_custom_call.1} parent=1 // pred_fallthru
      _
    // Predicated region
    $region42: #{tpu_custom_call.1} parent=1 // pred_check
      _
    $region43: #{tpu_custom_call.1} parent=1 // pred_check_branch
      %84 = sbr.rel (0) target = $region45
    $region44: #{tpu_custom_call.1} parent=1 // pred_region
      %86 = dma.done [#allocation4], 2048
    $region45: #{tpu_custom_call.1} parent=1 // pred_fallthru
      _
    // Predicated region
    $region46: #{tpu_custom_call.1} parent=1 // pred_check
      _
    $region47: #{tpu_custom_call.1} parent=1 // pred_check_branch
      %88 = sbr.rel (0) target = $region49
    $region48: #{tpu_custom_call.1} parent=1 // pred_region
      %90 = dma.done [#allocation7], 512
    $region49: #{tpu_custom_call.1} parent=1 // pred_fallthru
      _
    // Predicated region
    $region50: #{tpu_custom_call.1} parent=1 // pred_check
      _
    $region51: #{tpu_custom_call.1} parent=1 // pred_check_branch
      %92 = sbr.rel (0) target = $region53
    $region52: #{tpu_custom_call.1} parent=1 // pred_region
      %94 = dma.done [#allocation7], 512
    $region53: #{tpu_custom_call.1} parent=1 // pred_fallthru
      _
    // Predicated region
    $region54: #{tpu_custom_call.1} parent=1 // pred_check
      _
    $region55: #{tpu_custom_call.1} parent=1 // pred_check_branch
      %96 = sbr.rel (0) target = $region57
    $region56: #{tpu_custom_call.1} parent=1 // pred_region
      %98 = dma.done [#allocation10], 512
    $region57: #{tpu_custom_call.1} parent=1 // pred_fallthru
      _
    %p99 = scmp.eq.s32.totalorder 0, 0
    // Predicated region
    $region58: #{tpu_custom_call.1} parent=1 // pred_check
      %p100 = pneg %p99
    $region59: #{tpu_custom_call.1} parent=1 // pred_check_branch
      %102 = sbr.rel (%p100) target = $region61
    $region60: #{tpu_custom_call.1} parent=1 // pred_region
      %vm103 = vcmask 254976
      %104 = vst.msk [vmem:[#allocation2] sm:$0x3] %vm103, 0.0
    $region61: #{tpu_custom_call.1} parent=1 // pred_fallthru
      _
    %v105 = vld [vmem:[#allocation2] sm:$0x3]
    %v106 = vld [vmem:[#allocation3] sm:$0xff]
    %v107 = vld [vmem:[#allocation3 + $0x8] sm:$0xff]
    %v108 = vld [vmem:[#allocation3 + $0x10] sm:$0xff]
    %v109 = vld [vmem:[#allocation3 + $0x18] sm:$0xff]
    %v110 = vld [vmem:[#allocation3 + $0x20] sm:$0xff]
    %v111 = vld [vmem:[#allocation3 + $0x28] sm:$0xff]
    %v112 = vld [vmem:[#allocation3 + $0x30] sm:$0xff]
    %v113 = vld [vmem:[#allocation3 + $0x38] sm:$0xff]
    %v114 = vld [vmem:[#allocation3 + $0x40] sm:$0xff]
    %v115 = vld [vmem:[#allocation3 + $0x48] sm:$0xff]
    %v116 = vld [vmem:[#allocation3 + $0x50] sm:$0xff]
    %v117 = vld [vmem:[#allocation3 + $0x58] sm:$0xff]
    %v118 = vld [vmem:[#allocation3 + $0x60] sm:$0xff]
    %v119 = vld [vmem:[#allocation3 + $0x68] sm:$0xff]
    %v120 = vld [vmem:[#allocation3 + $0x70] sm:$0xff]
    %v121 = vld [vmem:[#allocation3 + $0x78] sm:$0xff]
    %v122 = vadd.f32 %v106, %v107
    %123 = vadd.xlane.f32.xlu0 %v122
    %v124 = vpop.xlane.xlu0 %123
    %v125 = vadd.f32 %v108, %v109
    %126 = vadd.xlane.f32.xlu0 %v125
    %v127 = vpop.xlane.xlu0 %126
    %v128 = vadd.f32 %v110, %v111
    %129 = vadd.xlane.f32.xlu0 %v128
    %v130 = vpop.xlane.xlu0 %129
    %v131 = vadd.f32 %v112, %v113
    %132 = vadd.xlane.f32.xlu0 %v131
    %v133 = vpop.xlane.xlu0 %132
    %v134 = vadd.f32 %v114, %v115
    %135 = vadd.xlane.f32.xlu0 %v134
    %v136 = vpop.xlane.xlu0 %135
    %v137 = vadd.f32 %v116, %v117
    %138 = vadd.xlane.f32.xlu0 %v137
    %v139 = vpop.xlane.xlu0 %138
    %v140 = vadd.f32 %v118, %v119
    %141 = vadd.xlane.f32.xlu0 %v140
    %v142 = vpop.xlane.xlu0 %141
    %v143 = vadd.f32 %v120, %v121
    %144 = vadd.xlane.f32.xlu0 %v143
    %v145 = vpop.xlane.xlu0 %144
    %v154 = vlaneseq
    %v155 = vand.u32 %v154, 127
    %v156 = vperm.slane %v124, %v155
    %v157 = vadd.s32 %v155, 4294967288
    %v158 = vperm.slane %v127, %v157
    %vm159 = vcmask 130112
    %v160 = vsel %vm159, %v158, %v156
    %v161 = vadd.s32 %v155, 4294967280
    %v162 = vperm.slane %v130, %v161
    %vm163 = vcmask 195712
    %v164 = vsel %vm163, %v162, %v160
    %v165 = vadd.s32 %v155, 4294967272
    %v166 = vperm.slane %v133, %v165
    %vm167 = vcmask 261312
    %v168 = vsel %vm167, %v166, %v164
    %v169 = vperm.slane %v136, %v155
    %v170 = vperm.slane %v139, %v157
    %v171 = vsel %vm159, %v170, %v169
    %v172 = vperm.slane %v142, %v161
    %v173 = vsel %vm163, %v172, %v171
    %v174 = vperm.slane %v145, %v165
    %v175 = vsel %vm167, %v174, %v173
    %vm176 = vcmask 1041409
    %v177 = vsel %vm176, %v175, %v168
    %v179 = vadd.f32 %v105, %v177
    %vm180 = vcmask 254976
    %181 = vst.msk [vmem:[#allocation2] sm:$0x3] %vm180, %v179
    // Predicated region
    $region62: #{tpu_custom_call.1} parent=1 // pred_check
      %p182 = pneg %p99
    $region63: #{tpu_custom_call.1} parent=1 // pred_check_branch
      %184 = sbr.rel (%p182) target = $region65
    $region64: #{tpu_custom_call.1} parent=1 // pred_region
      %v185 = vld [vmem:[#allocation2] sm:$0x3]
      %v186 = vmul.f32 %v185, 0.00390625
      %v187 = vld [vmem:[%s1] sm:$0x3]
      %v188 = vld [vmem:[%s2] sm:$0x1]
      %190 = vset.pattern.permute.xlu0 0
      %191 = vperm.xlu0 %190, %v187
      %v192 = vpop.permute.xlu0 %191
      %v195 = vperm.slane %v188, 0
      %v197 = vmul.f32 %v192, %v195
      %v198 = vld [vmem:[%s3] sm:$0x1]
      %v200 = vperm.slane %v198, 0
      %v202 = vadd.f32 %v197, %v200
      %v203 = vmul.f32 %v202, 0.5
      %v204 = vmul.f32 %v202, 0.70710677
      %v205 = vmul.f32 %v204, %v204
      %v206 = vmin.f32 16.0, %v205
      %v207 = vmul.f32 %v206, 2.1237322e-06
      %v208 = vadd.f32 %v207, 0.00028619796
      %v209 = vmul.f32 %v206, %v208
      %v210 = vadd.f32 %v209, 0.0036580483
      %v211 = vmul.f32 %v206, %v210
      %v212 = vadd.f32 %v211, 0.05243302
      %v213 = vmul.f32 %v206, %v212
      %v214 = vadd.f32 %v213, 0.18741608
      %v215 = vmul.f32 %v206, %v214
      %v216 = vadd.f32 %v215, 1.1283791
      %v217 = vmul.f32 %v204, %v216
      %v218 = vmul.f32 %v206, 3.8918573e-05
      %v219 = vadd.f32 %v218, 0.001143296
      %v220 = vmul.f32 %v206, %v219
      %v221 = vadd.f32 %v220, 0.014752088
      %v222 = vmul.f32 %v206, %v221
      %v223 = vadd.f32 %v222, 0.112945676
      %v224 = vmul.f32 %v206, %v223
      %v225 = vadd.f32 %v224, 0.4994258
      %v226 = vmul.f32 %v206, %v225
      %v227 = vadd.f32 %v226, 1.0
      %v228 = vrcp.pop %v227
      %v229 = vmul.f32 %v227, %v228
      %v230 = vsub.f32 1.0, %v229
      %v231 = vmul.f32 %v228, %v230
      %v232 = vadd.f32 %v228, %v231
      %vm233 = vweird.f32 %v227
      %vm234 = vweird.f32 %v228
      %vm235 = vmor %vm233, %vm234
      %v236 = vsel %vm235, %v228, %v232
      %v237 = vand.u32 2147483647, %v227
      %vm238 = vcmp.eq.f32.partialorder %v237, 8.507059e+37
      %v239 = vand.u32 %v227, 2147483648
      %v240 = vor.u32 1.1754944e-38, %v239
      %v241 = vsel %vm238, %v240, %v236
      %v242 = vmul.f32 %v217, %v241
      %v243 = vmin.f32 %v242, 1.0
      %v244 = vmax.f32 %v243, -1.0
      %v245 = vadd.f32 %v244, 1.0
      %v246 = vmul.f32 %v203, %v245
      %v247 = vld [vmem:[#allocation6] sm:$0xff]
      %v248 = vld [vmem:[#allocation6 + $0x8] sm:$0xff]
      %v249 = vld [vmem:[#allocation6 + $0x10] sm:$0xff]
      %v250 = vld [vmem:[#allocation6 + $0x18] sm:$0xff]
      %v251 = vld [vmem:[%s5] sm:$0x1]
      %v253 = vperm.slane %v251, 0
      %vm255 = vcmask 261120
      %v257 = vsel %vm255, %v246, 0
      %259 = vmatpush.msra.mxu0 0.0
      %260 = vmatpush.msra.mxu0 0.0
      %261 = vmatpush.msra.mxu0 0.0
      %262 = vmatpush.msra.mxu0 0.0
      %263 = vmatpush.msra.mxu0 0.0
      %264 = vmatpush.msra.mxu0 0.0
      %265 = vmatpush.msra.mxu0 0.0
      %266 = vmatpush.msra.mxu0 0.0
      %267 = vmatpush.msra.mxu0 0.0
      %268 = vmatpush.msra.mxu0 0.0
      %269 = vmatpush.msra.mxu0 0.0
      %270 = vmatpush.msra.mxu0 0.0
      %271 = vmatpush.msra.mxu0 %v250
      %272 = vmatpush.msra.mxu0 %v249
      %273 = vmatpush.msra.mxu0 %v248
      %274 = vmatpush.msra.mxu0 %v247
      %275 = vmatmul.f32.gmra.mxu0 %v257
      %v276 = vpop.f32.mrf.mxu0
      %v277 = vadd.f32 %v253, %v276
      %278 = vdwg.mxu0
      %v279 = vadd.f32 %v186, %v277
      %v280 = vld [vmem:[#allocation8] sm:$0xff]
      %v281 = vld [vmem:[#allocation8 + $0x8] sm:$0xff]
      %v282 = vld [vmem:[#allocation8 + $0x10] sm:$0xff]
      %v283 = vld [vmem:[#allocation8 + $0x18] sm:$0xff]
      %v284 = vld [vmem:[%s7] sm:$0x1]
      %v286 = vperm.slane %v284, 0
      %v289 = vsel %vm255, %v279, 0
      %291 = vmatpush.msra.mxu0 0.0
      %292 = vmatpush.msra.mxu0 0.0
      %293 = vmatpush.msra.mxu0 0.0
      %294 = vmatpush.msra.mxu0 0.0
      %295 = vmatpush.msra.mxu0 0.0
      %296 = vmatpush.msra.mxu0 0.0
      %297 = vmatpush.msra.mxu0 0.0
      %298 = vmatpush.msra.mxu0 0.0
      %299 = vmatpush.msra.mxu0 0.0
      %300 = vmatpush.msra.mxu0 0.0
      %301 = vmatpush.msra.mxu0 0.0
      %302 = vmatpush.msra.mxu0 0.0
      %303 = vmatpush.msra.mxu0 %v283
      %304 = vmatpush.msra.mxu0 %v282
      %305 = vmatpush.msra.mxu0 %v281
      %306 = vmatpush.msra.mxu0 %v280
      %307 = vmatmul.f32.gmra.mxu0 %v289
      %v308 = vpop.f32.mrf.mxu0
      %v309 = vadd.f32 %v286, %v308
      %310 = vdwg.mxu0
      %v311 = vmul.f32 %v309, 0.5
      %v312 = vmul.f32 %v309, 0.70710677
      %v313 = vmul.f32 %v312, %v312
      %v314 = vmin.f32 16.0, %v313
      %v315 = vmul.f32 %v314, 2.1237322e-06
      %v316 = vadd.f32 %v315, 0.00028619796
      %v317 = vmul.f32 %v314, %v316
      %v318 = vadd.f32 %v317, 0.0036580483
      %v319 = vmul.f32 %v314, %v318
      %v320 = vadd.f32 %v319, 0.05243302
      %v321 = vmul.f32 %v314, %v320
      %v322 = vadd.f32 %v321, 0.18741608
      %v323 = vmul.f32 %v314, %v322
      %v324 = vadd.f32 %v323, 1.1283791
      %v325 = vmul.f32 %v312, %v324
      %v326 = vmul.f32 %v314, 3.8918573e-05
      %v327 = vadd.f32 %v326, 0.001143296
      %v328 = vmul.f32 %v314, %v327
      %v329 = vadd.f32 %v328, 0.014752088
      %v330 = vmul.f32 %v314, %v329
      %v331 = vadd.f32 %v330, 0.112945676
      %v332 = vmul.f32 %v314, %v331
      %v333 = vadd.f32 %v332, 0.4994258
      %v334 = vmul.f32 %v314, %v333
      %v335 = vadd.f32 %v334, 1.0
      %v336 = vrcp.pop %v335
      %v337 = vmul.f32 %v335, %v336
      %v338 = vsub.f32 1.0, %v337
      %v339 = vmul.f32 %v336, %v338
      %v340 = vadd.f32 %v336, %v339
      %vm341 = vweird.f32 %v335
      %vm342 = vweird.f32 %v336
      %vm343 = vmor %vm341, %vm342
      %v344 = vsel %vm343, %v336, %v340
      %v345 = vand.u32 2147483647, %v335
      %vm346 = vcmp.eq.f32.partialorder %v345, 8.507059e+37
      %v347 = vand.u32 %v335, 2147483648
      %v348 = vor.u32 1.1754944e-38, %v347
      %v349 = vsel %vm346, %v348, %v344
      %v350 = vmul.f32 %v325, %v349
      %v351 = vmin.f32 %v350, 1.0
      %v352 = vmax.f32 %v351, -1.0
      %v353 = vadd.f32 %v352, 1.0
      %v354 = vmul.f32 %v311, %v353
      %v355 = vld [vmem:[#allocation9] sm:$0xff]
      %v356 = vld [vmem:[#allocation9 + $0x8] sm:$0xff]
      %v357 = vld [vmem:[#allocation9 + $0x10] sm:$0xff]
      %v358 = vld [vmem:[#allocation9 + $0x18] sm:$0xff]
      %v359 = vld [vmem:[%s9] sm:$0x1]
      %v361 = vperm.slane %v359, 0
      %v364 = vsel %vm255, %v354, 0
      %366 = vmatpush.msra.mxu0 0.0
      %367 = vmatpush.msra.mxu0 0.0
      %368 = vmatpush.msra.mxu0 0.0
      %369 = vmatpush.msra.mxu0 0.0
      %370 = vmatpush.msra.mxu0 0.0
      %371 = vmatpush.msra.mxu0 0.0
      %372 = vmatpush.msra.mxu0 0.0
      %373 = vmatpush.msra.mxu0 0.0
      %374 = vmatpush.msra.mxu0 0.0
      %375 = vmatpush.msra.mxu0 0.0
      %376 = vmatpush.msra.mxu0 0.0
      %377 = vmatpush.msra.mxu0 0.0
      %378 = vmatpush.msra.mxu0 %v358
      %379 = vmatpush.msra.mxu0 %v357
      %380 = vmatpush.msra.mxu0 %v356
      %381 = vmatpush.msra.mxu0 %v355
      %382 = vmatmul.f32.gmra.mxu0 %v364
      %v383 = vpop.f32.mrf.mxu0
      %v384 = vadd.f32 %v361, %v383
      %385 = vdwg.mxu0
      %v386 = vmul.f32 %v384, 0.1
      %387 = vst.msk [vmem:[#allocation11] sm:$0x3] %vm180, %v386
    $region65: #{tpu_custom_call.1} parent=1 // pred_fallthru
      _
    // Predicated region
    $region66: #{tpu_custom_call.1} parent=1 // pred_check
      _
    $region67: #{tpu_custom_call.1} parent=1 // pred_check_branch
      %389 = sbr.rel (0) target = $region69
    $region68: #{tpu_custom_call.1} parent=1 // pred_region
      %391 = vsyncadd [#allocation5], 0
      %s393 = sshll.u32 [#allocation11], 4
      %s394 = int_to_ptr.vmem [resolvable:$true] %s393
      %s395 = sshll.u32 %s10, 4
      %s396 = int_to_ptr.hbm [resolvable:$true] %s395
      %398 = dma.vmem_to_hbm [thread:$0]  %s394, 32, %s396, [#allocation5]
    $region69: #{tpu_custom_call.1} parent=1 // pred_fallthru
      _
    // Predicated region
    $region70: #{tpu_custom_call.1} parent=1 // pred_check
      _
    $region71: #{tpu_custom_call.1} parent=1 // pred_check_branch
      %400 = sbr.rel (0) target = $region73
    $region72: #{tpu_custom_call.1} parent=1 // pred_region
      %402 = dma.done [#allocation5], 32
    $region73: #{tpu_custom_call.1} parent=1 // pred_fallthru
      _
    %403 = vsyncpa [#allocation4], 1
    %404 = vsyncpa [#allocation7], 1
    %405 = vsyncpa [#allocation10], 1
    %406 = vsyncpa [#allocation5], 1

</llo_original>
